<compile_context>
chip_gen: v5e
topology: v5e:2x2
jax: 0.10.0
libtpu: 0.0.40
codegen_flags: <defaults>
</compile_context>

<pallas_src>
import jax
import jax.numpy as jnp
from jax.experimental import pallas as pl
from jax.experimental.pallas import tpu as pltpu

SPR = 64  # samples per output row: 64 samples -> 256 input lanes / 128 output lanes


def _round_up(n, m):
    return ((n + m - 1) // m) * m


def _cdiv(n, m):
    return (n + m - 1) // m


def policy_kernel(x_ref, a_ref, b_ref, o_ref):
    """x_ref: (tr, 256) f32 VMEM  -- 64 samples x 4 features per row (natural layout)
       a_ref: (256, 128) f32 VMEM -- fused linear/softmax-difference matrix
       b_ref: (1, 128)  f32 VMEM  -- fused bias pattern (+db, -db, +db, ...)
       o_ref: (tr, 128) f32 VMEM  -- 64 samples x 2 class probs per row (natural layout)
    """
    d = jnp.dot(x_ref[...], a_ref[...], preferred_element_type=jnp.float32)
    d = d + b_ref[...]
    # sigmoid(d): exact division so each class pair sums to 1 (to rounding).
    o_ref[...] = 1.0 / (1.0 + jnp.exp(-d))


def policy_forward(x, w, b, *, block_rows=1024):
    """x: (B, 4), w: (2, 4) (PyTorch out,in), b: (2,)
       returns softmax(x @ w.T + b, axis=1) as (B, 2) float32."""
    B = x.shape[0]
    x = x.astype(jnp.float32)
    w = w.astype(jnp.float32)
    b = b.astype(jnp.float32)

    rows_needed = _cdiv(B, SPR)
    tr = max(8, min(block_rows, _round_up(rows_needed, 8)))
    tr = _round_up(tr, 8)                 # dense sublanes
    R = _round_up(rows_needed, tr)        # grid divides evenly
    Bp = R * SPR

    xp = x if Bp == B else jnp.pad(x, ((0, Bp - B), (0, 0)))
    xr = xp.reshape(R, 4 * SPR)           # free contiguous reshape, (R, 256)

    # Fused constant matrix A:  A[g*4+k, h*2+c] = [g == h] * (+/-)(W[0,k]-W[1,k])
    dvec = w[0] - w[1]                                  # (4,)
    blk = jnp.stack([dvec, -dvec], axis=1)              # (4, 2)
    a_mat = (jnp.eye(SPR, dtype=jnp.float32)[:, None, :, None]
             * blk[None, :, None, :]).reshape(4 * SPR, 2 * SPR)   # (256, 128)
    db = b[0] - b[1]
    b_pat = jnp.tile(jnp.array([1.0, -1.0], jnp.float32) * db,
                     SPR).reshape(1, 2 * SPR)                     # (1, 128)

    grid = (R // tr,)
    out = pl.pallas_call(
        policy_kernel,
        out_shape=jax.ShapeDtypeStruct((R, 2 * SPR), jnp.float32),
        grid=grid,
        in_specs=[
            pl.BlockSpec((tr, 4 * SPR), lambda i: (i, 0)),        # x tile
            pl.BlockSpec((4 * SPR, 2 * SPR), lambda i: (0, 0)),   # A (resident)
            pl.BlockSpec((1, 2 * SPR), lambda i: (0, 0)),         # bias pattern
        ],
        out_specs=pl.BlockSpec((tr, 2 * SPR), lambda i: (i, 0)),
        compiler_params=pltpu.CompilerParams(
            dimension_semantics=("parallel",)),
    )(xr, a_mat, b_pat)

    probs = out.reshape(Bp, 2)            # free contiguous reshape -> natural layout
    return probs if Bp == B else probs[:B]


def reference_forward(x, w, b):
    return jax.nn.softmax(x.astype(jnp.float32) @ w.T + b, axis=1)


if __name__ == "__main__":
    key = jax.random.PRNGKey(0)
    kx, kw, kb = jax.random.split(key, 3)

    # Parameters with nn.Linear(4, 2) shapes.
    w = jax.random.normal(kw, (2, 4), dtype=jnp.float32) * 0.5   # (out, in)
    b = jax.random.normal(kb, (2,), dtype=jnp.float32) * 0.1

    ok = True
    # (B=8, single tile)  and  (B=2048 with small tile -> 4 grid steps)
    for B, br in ((8, 1024), (2048, 8)):
        x = jax.random.normal(jax.random.fold_in(kx, B), (B, 4),
                              dtype=jnp.float32)
        out = jax.block_until_ready(policy_forward(x, w, b, block_rows=br))
        ref = reference_forward(x, w, b)
        ok &= out.shape == (B, 2)
        ok &= bool(jnp.allclose(out, ref, atol=1e-3, rtol=1e-3))
        ok &= bool(jnp.allclose(jnp.sum(out, axis=1), 1.0, atol=1e-3))

    assert ok, "mismatch vs reference"
    print("KERNEL_OK")
</pallas_src>

<mosaic_0001>
module attributes {stable_mosaic.version = 11 : i64} {
  func.func @policy_kernel(%arg0: i32, %arg1: memref<8x256xf32, #tpu.memory_space<vmem>>, %arg2: memref<256x128xf32, #tpu.memory_space<vmem>>, %arg3: memref<1x128xf32, #tpu.memory_space<vmem>>, %arg4: memref<8x128xf32, #tpu.memory_space<vmem>>) attributes {dimension_semantics = [#tpu.dimension_semantics<parallel>], iteration_bounds = array<i64: 1>, scalar_prefetch = 0 : i64, scratch_operands = 0 : i64, tpu.core_type = #tpu.core_type<tc>, window_params = [{transform_indices = @transform_0, window_bounds = array<i64: 8, 256>}, {pipeline_mode = #tpu.pipeline_mode<synchronous>, transform_indices = @transform_1, window_bounds = array<i64: 256, 128>}, {pipeline_mode = #tpu.pipeline_mode<synchronous>, transform_indices = @transform_2, window_bounds = array<i64: 1, 128>}, {transform_indices = @transform_3, window_bounds = array<i64: 8, 128>}]} {
    %c0 = arith.constant 0 : index
    %c0_0 = arith.constant 0 : index
    %0 = vector.load %arg1[%c0, %c0_0] : memref<8x256xf32, #tpu.memory_space<vmem>>, vector<8x256xf32>
    %c0_1 = arith.constant 0 : index
    %c0_2 = arith.constant 0 : index
    %1 = vector.load %arg2[%c0_1, %c0_2] : memref<256x128xf32, #tpu.memory_space<vmem>>, vector<256x128xf32>
    %cst = arith.constant dense<0.000000e+00> : vector<8x128xf32>
    %2 = tpu.matmul %0, %1, %cst {dimension_numbers = #tpu.dot_dimension_numbers<[1], [0], [0], [1], [0, 0, 1, 1], [], []>} : vector<8x256xf32>, vector<256x128xf32>, vector<8x128xf32> -> vector<8x128xf32>
    %c0_3 = arith.constant 0 : index
    %c0_4 = arith.constant 0 : index
    %3 = vector.load %arg3[%c0_3, %c0_4] : memref<1x128xf32, #tpu.memory_space<vmem>>, vector<1x128xf32>
    %4 = vector.broadcast %3 : vector<1x128xf32> to vector<8x128xf32>
    %5 = arith.addf %2, %4 : vector<8x128xf32>
    %cst_5 = arith.constant 0.000000e+00 : f32
    %6 = vector.broadcast %cst_5 : f32 to vector<8x128xf32>
    %7 = arith.subf %6, %5 : vector<8x128xf32>
    %8 = math.exp %7 : vector<8x128xf32>
    %cst_6 = arith.constant 1.000000e+00 : f32
    %9 = vector.broadcast %cst_6 : f32 to vector<8x128xf32>
    %10 = arith.addf %9, %8 : vector<8x128xf32>
    %cst_7 = arith.constant 1.000000e+00 : f32
    %11 = vector.broadcast %cst_7 : f32 to vector<8x128xf32>
    %12 = arith.divf %11, %10 : vector<8x128xf32>
    %c0_8 = arith.constant 0 : index
    %c0_9 = arith.constant 0 : index
    %13 = vector.load %arg4[%c0_8, %c0_9] : memref<8x128xf32, #tpu.memory_space<vmem>>, vector<8x128xf32>
    tpu.vector_store %arg4[%c0_8, %c0_9], %12 {strides = array<i32>} : memref<8x128xf32, #tpu.memory_space<vmem>>, vector<8x128xf32>,
    return
  }
  func.func @transform_0(%arg0: i32) -> (i32, i32) {
    %c0_i32 = arith.constant 0 : i32
    %c0_i32_0 = arith.constant 0 : i32
    return %arg0, %c0_i32 : i32, i32
  }
  func.func @transform_1(%arg0: i32) -> (i32, i32) {
    %c0_i32 = arith.constant 0 : i32
    %c0_i32_0 = arith.constant 0 : i32
    %c0_i32_1 = arith.constant 0 : i32
    return %c0_i32, %c0_i32_0 : i32, i32
  }
  func.func @transform_2(%arg0: i32) -> (i32, i32) {
    %c0_i32 = arith.constant 0 : i32
    %c0_i32_0 = arith.constant 0 : i32
    %c0_i32_1 = arith.constant 0 : i32
    return %c0_i32, %c0_i32_0 : i32, i32
  }
  func.func @transform_3(%arg0: i32) -> (i32, i32) {
    %c0_i32 = arith.constant 0 : i32
    %c0_i32_0 = arith.constant 0 : i32
    return %arg0, %c0_i32 : i32, i32
  }
}

</mosaic_0001>

<llo_original>
// kernel: tpu_custom_call.1
$region0: #{tpu_custom_call.1}
  #allocation0 [shape = 'u32[]', space=smem, size = 0x4, offset = 0x4, fixed_abs, tag = 'smem constant byte address 0x4 - core index']
  #allocation1 [shape = 'u32[72,128]{1,0:T(1,128)}', space=vmem, size = 0x9000, scoped, tag = 'internal scratch']
  %s0 = inlined_call_operand.hbm [shape: f32[8,256], index: 0, kind: input, shape index: {}]
  %s1 = inlined_call_operand.hbm [shape: f32[256,128], index: 1, kind: input, shape index: {}]
  %s2 = inlined_call_operand.vmem [shape: f32[1,128], index: 2, kind: input, shape index: {}]
  %s3 = inlined_call_operand.hbm [shape: f32[8,128], index: 3, kind: output, shape index: {}]
  %s4 = sld [smem:[#allocation0]]
  $region30: #{tpu_custom_call.1} parent=0
    _
  %s6 = ssub.s32 1, %s4
  %s7 = scalar_select 0, %s6, %s4
  $region1: #{tpu_custom_call.1} parent=0
    #allocation2 [shape = 'u8[8192]{0}', space=vmem, size = 0x2000, scoped, tag = 'input window, operand 0, single buffered']
    #allocation3 [shape = 's32[1]{0}', space=sflag, size = 0x4, scoped, tag = 'scoped memory for tpu_custom_call.1']
    #allocation4 [shape = 's32[1]{0}', space=sflag, size = 0x4, scoped, tag = 'scoped memory for tpu_custom_call.1']
    #allocation5 [shape = 'u8[131072]{0}', space=vmem, size = 0x20000, scoped, tag = 'input window, operand 1, single buffered']
    #allocation6 [shape = 's32[1]{0}', space=sflag, size = 0x4, scoped, tag = 'scoped memory for tpu_custom_call.1']
    #allocation7 [shape = 'u8[4096]{0}', space=vmem, size = 0x1000, scoped, tag = 'output window, operand 0, single buffered']
    %8 = vsyncpa [#allocation3], 0
    %9 = vsyncpa [#allocation6], 0
    %10 = vsyncpa [#allocation4], 0
    // Predicated region
    $region2: #{tpu_custom_call.1} parent=1 // pred_check
      _
    $region3: #{tpu_custom_call.1} parent=1 // pred_check_branch
      %12 = sbr.rel (0) target = $region5
    $region4: #{tpu_custom_call.1} parent=1 // pred_region
      %14 = vsyncadd [#allocation3], 0
      %s16 = sshll.u32 %s0, 4
      %s17 = int_to_ptr.hbm [resolvable:$true] %s16
      %s18 = sshll.u32 [#allocation2], 4
      %s19 = int_to_ptr.vmem [resolvable:$true] %s18
      %21 = dma.hbm_to_vmem [thread:$0]  %s17, 256, %s19, [#allocation3]
    $region5: #{tpu_custom_call.1} parent=1 // pred_fallthru
      _
    // Predicated region
    $region6: #{tpu_custom_call.1} parent=1 // pred_check
      _
    $region7: #{tpu_custom_call.1} parent=1 // pred_check_branch
      %23 = sbr.rel (0) target = $region9
    $region8: #{tpu_custom_call.1} parent=1 // pred_region
      %25 = vsyncadd [#allocation6], 0
      %s26 = sshll.u32 %s1, 4
      %s27 = int_to_ptr.hbm [resolvable:$true] %s26
      %s28 = sshll.u32 [#allocation5], 4
      %s29 = int_to_ptr.vmem [resolvable:$true] %s28
      %34 = dma.hbm_to_vmem [thread:$0]  %s27, 4096, %s29, [#allocation6], 128, 128, 8
    $region9: #{tpu_custom_call.1} parent=1 // pred_fallthru
      _
    // Predicated region
    $region10: #{tpu_custom_call.1} parent=1 // pred_check
      _
    $region11: #{tpu_custom_call.1} parent=1 // pred_check_branch
      %36 = sbr.rel (0) target = $region13
    $region12: #{tpu_custom_call.1} parent=1 // pred_region
      _
    $region13: #{tpu_custom_call.1} parent=1 // pred_fallthru
      _
    // Predicated region
    $region14: #{tpu_custom_call.1} parent=1 // pred_check
      _
    $region15: #{tpu_custom_call.1} parent=1 // pred_check_branch
      %38 = sbr.rel (0) target = $region17
    $region16: #{tpu_custom_call.1} parent=1 // pred_region
      %40 = dma.done [#allocation3], 256
    $region17: #{tpu_custom_call.1} parent=1 // pred_fallthru
      _
    // Predicated region
    $region18: #{tpu_custom_call.1} parent=1 // pred_check
      _
    $region19: #{tpu_custom_call.1} parent=1 // pred_check_branch
      %42 = sbr.rel (0) target = $region21
    $region20: #{tpu_custom_call.1} parent=1 // pred_region
      %44 = dma.done [#allocation6], 4096
    $region21: #{tpu_custom_call.1} parent=1 // pred_fallthru
      _
    %v45 = vld [vmem:[#allocation2] sm:$0xff]
    %v46 = vld [vmem:[#allocation2 + $0x8] sm:$0xff]
    %v47 = vld [vmem:[#allocation5] sm:$0xff]
    %v48 = vld [vmem:[#allocation5 + $0x8] sm:$0xff]
    %v49 = vld [vmem:[#allocation5 + $0x10] sm:$0xff]
    %v50 = vld [vmem:[#allocation5 + $0x18] sm:$0xff]
    %v51 = vld [vmem:[#allocation5 + $0x20] sm:$0xff]
    %v52 = vld [vmem:[#allocation5 + $0x28] sm:$0xff]
    %v53 = vld [vmem:[#allocation5 + $0x30] sm:$0xff]
    %v54 = vld [vmem:[#allocation5 + $0x38] sm:$0xff]
    %v55 = vld [vmem:[#allocation5 + $0x40] sm:$0xff]
    %v56 = vld [vmem:[#allocation5 + $0x48] sm:$0xff]
    %v57 = vld [vmem:[#allocation5 + $0x50] sm:$0xff]
    %v58 = vld [vmem:[#allocation5 + $0x58] sm:$0xff]
    %v59 = vld [vmem:[#allocation5 + $0x60] sm:$0xff]
    %v60 = vld [vmem:[#allocation5 + $0x68] sm:$0xff]
    %v61 = vld [vmem:[#allocation5 + $0x70] sm:$0xff]
    %v62 = vld [vmem:[#allocation5 + $0x78] sm:$0xff]
    %v63 = vld [vmem:[#allocation5 + $0x80] sm:$0xff]
    %v64 = vld [vmem:[#allocation5 + $0x88] sm:$0xff]
    %v65 = vld [vmem:[#allocation5 + $0x90] sm:$0xff]
    %v66 = vld [vmem:[#allocation5 + $0x98] sm:$0xff]
    %v67 = vld [vmem:[#allocation5 + $0xa0] sm:$0xff]
    %v68 = vld [vmem:[#allocation5 + $0xa8] sm:$0xff]
    %v69 = vld [vmem:[#allocation5 + $0xb0] sm:$0xff]
    %v70 = vld [vmem:[#allocation5 + $0xb8] sm:$0xff]
    %v71 = vld [vmem:[#allocation5 + $0xc0] sm:$0xff]
    %v72 = vld [vmem:[#allocation5 + $0xc8] sm:$0xff]
    %v73 = vld [vmem:[#allocation5 + $0xd0] sm:$0xff]
    %v74 = vld [vmem:[#allocation5 + $0xd8] sm:$0xff]
    %v75 = vld [vmem:[#allocation5 + $0xe0] sm:$0xff]
    %v76 = vld [vmem:[#allocation5 + $0xe8] sm:$0xff]
    %v77 = vld [vmem:[#allocation5 + $0xf0] sm:$0xff]
    %v78 = vld [vmem:[#allocation5 + $0xf8] sm:$0xff]
    %v79 = vld [vmem:[%s2] sm:$0x1]
    %v81 = vperm.slane %v79, 0
    %83 = vmatpush.msra.mxu0 %v62
    %84 = vmatpush.msra.mxu0 %v61
    %85 = vmatpush.msra.mxu0 %v60
    %86 = vmatpush.msra.mxu0 %v59
    %87 = vmatpush.msra.mxu0 %v58
    %88 = vmatpush.msra.mxu0 %v57
    %89 = vmatpush.msra.mxu0 %v56
    %90 = vmatpush.msra.mxu0 %v55
    %91 = vmatpush.msra.mxu0 %v54
    %92 = vmatpush.msra.mxu0 %v53
    %93 = vmatpush.msra.mxu0 %v52
    %94 = vmatpush.msra.mxu0 %v51
    %95 = vmatpush.msra.mxu0 %v50
    %96 = vmatpush.msra.mxu0 %v49
    %97 = vmatpush.msra.mxu0 %v48
    %98 = vmatpush.msra.mxu0 %v47
    %99 = vmatmul.f32.gmra.mxu0 %v45
    %v100 = vpop.f32.mrf.mxu0
    %v101 = vadd.f32 %v81, %v100
    %102 = vdwg.mxu0
    %103 = vmatpush.msra.mxu0 %v78
    %104 = vmatpush.msra.mxu0 %v77
    %105 = vmatpush.msra.mxu0 %v76
    %106 = vmatpush.msra.mxu0 %v75
    %107 = vmatpush.msra.mxu0 %v74
    %108 = vmatpush.msra.mxu0 %v73
    %109 = vmatpush.msra.mxu0 %v72
    %110 = vmatpush.msra.mxu0 %v71
    %111 = vmatpush.msra.mxu0 %v70
    %112 = vmatpush.msra.mxu0 %v69
    %113 = vmatpush.msra.mxu0 %v68
    %114 = vmatpush.msra.mxu0 %v67
    %115 = vmatpush.msra.mxu0 %v66
    %116 = vmatpush.msra.mxu0 %v65
    %117 = vmatpush.msra.mxu0 %v64
    %118 = vmatpush.msra.mxu0 %v63
    %119 = vmatmul.f32.gmra.mxu0 %v46
    %v120 = vpop.f32.mrf.mxu0
    %v121 = vadd.f32 %v101, %v120
    %122 = vdwg.mxu0
    %v123 = vsub.f32 0.0, %v121
    %v124 = vmul.f32 %v123, 1.442695
    %v125 = vpow.pop %v124
    %v126 = vadd.f32 %v125, 1.0
    %v127 = vrcp.pop %v126
    %v128 = vmul.f32 %v126, %v127
    %v129 = vsub.f32 1.0, %v128
    %v130 = vmul.f32 %v127, %v129
    %v131 = vadd.f32 %v127, %v130
    %vm132 = vweird.f32 %v126
    %vm133 = vweird.f32 %v127
    %vm134 = vmor %vm132, %vm133
    %v135 = vsel %vm134, %v127, %v131
    %v136 = vand.u32 2147483647, %v126
    %vm137 = vcmp.eq.f32.partialorder %v136, 8.507059e+37
    %v138 = vand.u32 %v126, 2147483648
    %v139 = vor.u32 1.1754944e-38, %v138
    %v140 = vsel %vm137, %v139, %v135
    %v141 = vmul.f32 1.0, %v140
    %142 = vst [vmem:[#allocation7] sm:$0xff] %v141
    // Predicated region
    $region22: #{tpu_custom_call.1} parent=1 // pred_check
      _
    $region23: #{tpu_custom_call.1} parent=1 // pred_check_branch
      %144 = sbr.rel (0) target = $region25
    $region24: #{tpu_custom_call.1} parent=1 // pred_region
      %146 = vsyncadd [#allocation4], 0
      %s148 = sshll.u32 [#allocation7], 4
      %s149 = int_to_ptr.vmem [resolvable:$true] %s148
      %s150 = sshll.u32 %s3, 4
      %s151 = int_to_ptr.hbm [resolvable:$true] %s150
      %153 = dma.vmem_to_hbm [thread:$0]  %s149, 128, %s151, [#allocation4]
    $region25: #{tpu_custom_call.1} parent=1 // pred_fallthru
      _
    // Predicated region
    $region26: #{tpu_custom_call.1} parent=1 // pred_check
      _
    $region27: #{tpu_custom_call.1} parent=1 // pred_check_branch
      %155 = sbr.rel (0) target = $region29
    $region28: #{tpu_custom_call.1} parent=1 // pred_region
      %157 = dma.done [#allocation4], 128
    $region29: #{tpu_custom_call.1} parent=1 // pred_fallthru
      _
    %158 = vsyncpa [#allocation3], 1
    %159 = vsyncpa [#allocation6], 1
    %160 = vsyncpa [#allocation4], 1

</llo_original>
